<compile_context>
chip_gen: v7x
topology: tpu7x:2x2x1
jax: 0.10.0
libtpu: 0.0.40
codegen_flags: <defaults>
</compile_context>

<pallas_src>
import jax
import jax.numpy as jnp
from jax import lax
from jax.experimental import pallas as pl
from jax.experimental.pallas import tpu as pltpu


def _default_num_cores() -> int:
    """2 TensorCores per chip only on v7x; v5e/v6e are single-TC."""
    try:
        kind = jax.devices()[0].device_kind.lower()
    except Exception:
        return 1
    return 2 if "7" in kind else 1


def _make_partial_kernel(m: int, tm: int, steps: int):
    """Builds the per-core partial-sum kernel for static (m, tm, steps)."""

    def kernel(x_ref, partial_ref, acc_ref):
        # Grid: (num_cores [parallel], steps [arbitrary]).
        # x_ref:       (tm, D) tile of flattened tokens (original dtype).
        # partial_ref: (1, 8, 128) per-core output block (only [:,0,0] used).
        # acc_ref:     (tm, 1) f32 VMEM accumulator of per-row norms.
        c = pl.program_id(0)
        i = pl.program_id(1)

        @pl.when(i == 0)
        def _():
            acc_ref[...] = jnp.zeros_like(acc_ref)

        # Mask rows beyond the true row count M BEFORE squaring, so garbage
        # in partial / clamped edge blocks (possibly NaN/Inf) never enters
        # the reduction.
        row0 = (c * steps + i) * tm
        rows = row0 + lax.broadcasted_iota(jnp.int32, (tm, 1), 0)
        valid = rows < m

        x = x_ref[...].astype(jnp.float32)          # (tm, D)
        x = jnp.where(valid, x, 0.0)
        sq = jnp.sum(x * x, axis=-1, keepdims=True)  # VPU square + XLU reduce
        acc_ref[...] += jnp.sqrt(sq)                 # EUP sqrt + VPU add

        @pl.when(i == pl.num_programs(1) - 1)
        def _():
            s = jnp.sum(acc_ref[...])                # single epilogue reduce
            partial_ref[...] = jnp.full(partial_ref.shape, s, dtype=jnp.float32)

    return kernel


def support_loss(tokens: jax.Array, support: float, alpha: float = 0.001,
                 *, num_cores: int | None = None,
                 tm_cap: int | None = None) -> jax.Array:
    """Pallas implementation of SupportLoss.forward. Returns a scalar f32."""
    support = float(support)
    alpha = float(alpha)

    d = tokens.shape[-1]
    x2d = tokens.reshape(-1, d)                       # (M, D), D on lanes
    m = x2d.shape[0]
    itemsize = jnp.dtype(x2d.dtype).itemsize
    pack = {4: 8, 2: 16, 1: 32}.get(itemsize, 8)      # sublane pack

    if num_cores is None:
        num_cores = _default_num_cores()

    # --- choose the row tile --------------------------------------------------
    # Target ~3 MiB of input per tile (near HBM roofline for any D), capped so
    # (2x double-buffered input tile + lane-padded (tm,1)->(tm,128) f32 acc)
    # stays under ~20 MiB total VMEM footprint (safe inside v7x's 32 MiB
    # scoped default, trivially safe on v5e/v6e).
    row_bytes = d * itemsize
    target_tile_bytes = 3 * 1024 * 1024
    tm_target = max(pack, (target_tile_bytes // row_bytes) // pack * pack)

    footprint_budget = 20 * 1024 * 1024
    per_row = 2 * row_bytes + 128 * 4
    tm_budget = max(pack, (footprint_budget // per_row) // pack * pack)

    tm_eff = min(tm_target, tm_budget)
    if tm_cap is not None:                            # test / tuning override
        tm_eff = min(tm_eff, max(pack, (tm_cap // pack) * pack))

    rows_per_core = -(-m // num_cores)                # cdiv
    tm_fit = -(-rows_per_core // pack) * pack         # round up to pack
    tm_eff = max(pack, (min(tm_eff, tm_fit) // pack) * pack)

    if tm_eff >= m:
        # Whole input fits in one block; block_shape == full array dim is
        # always legal, so no padding and no multi-core split needed.
        num_cores, tm_eff = 1, m

    nb = -(-m // tm_eff)                              # total row blocks
    steps = -(-nb // num_cores)                       # sequential steps / core

    kernel = _make_partial_kernel(m, tm_eff, steps)

    partials = pl.pallas_call(
        kernel,
        out_shape=jax.ShapeDtypeStruct((num_cores, 8, 128), jnp.float32),
        grid_spec=pltpu.PrefetchScalarGridSpec(
            num_scalar_prefetch=0,
            grid=(num_cores, steps),
            in_specs=[pl.BlockSpec(
                (tm_eff, d),
                # Clamp fully out-of-range block indices to the last valid
                # (partial) block; those rows are masked to zero in-kernel.
                lambda c, i: (jnp.minimum(c * steps + i, nb - 1), 0))],
            out_specs=pl.BlockSpec((1, 8, 128), lambda c, i: (c, 0, 0)),
            scratch_shapes=[pltpu.VMEM((tm_eff, 1), jnp.float32)],
        ),
        compiler_params=pltpu.CompilerParams(
            # leading axis: per-TC shard (2 TCs on v7x, size 1 elsewhere)
            # trailing axis: sequential reduction over row tiles
            dimension_semantics=("parallel", "arbitrary"),
            vmem_limit_bytes=32 * 1024 * 1024,
        ),
    )(x2d)

    # Scalar epilogue on the per-core partial sums (true token count M).
    norm_sum = jnp.sum(partials[:, 0, 0])
    mean_norm = norm_sum / jnp.float32(m)
    delta = jnp.float32(support) - mean_norm
    quad = jnp.float32(alpha) * delta * delta
    lin = -delta * jnp.log(mean_norm * jnp.float32(1.0 / support))
    return jnp.where(delta > jnp.float32(-1e-6), quad, lin)


def _support_loss_ref(tokens, support, alpha):
    # Pure-JAX reference mirroring the PyTorch module.
    norms = jnp.sqrt(jnp.sum(tokens.astype(jnp.float32) ** 2, axis=-1))
    mean_norm = jnp.mean(norms)
    delta = support - mean_norm
    return jnp.where(delta > -1e-6,
                     alpha * delta ** 2,
                     -delta * jnp.log(mean_norm / support))


if __name__ == "__main__":
    # SupportLoss has no learned parameters; only scalars support/alpha.
    alpha = 0.001
    key = jax.random.PRNGKey(0)

    # 1) Small ViT-like f32 tensor, quadratic branch (support > mean norm).
    B, N, D = 2, 8, 32
    tokens = jax.random.normal(key, (B, N, D), dtype=jnp.float32)
    support = 8.0
    out = jax.block_until_ready(support_loss(tokens, support, alpha))
    ref = _support_loss_ref(tokens, support, alpha)
    assert jnp.allclose(out, ref, rtol=1e-5, atol=1e-6), (out, ref)

    # 2) Scaled tokens -> mean norm >> support -> log branch.
    tokens_big = tokens * 10.0
    out2 = jax.block_until_ready(support_loss(tokens_big, support, alpha))
    ref2 = _support_loss_ref(tokens_big, support, alpha)
    assert jnp.allclose(out2, ref2, rtol=1e-5, atol=1e-6), (out2, ref2)

    # 3) Non-divisible token count (ViT-style N=197): single full-array block,
    #    no wrapper-side padding.
    key2 = jax.random.PRNGKey(1)
    tokens_odd = jax.random.normal(key2, (2, 197, 32), dtype=jnp.float32)
    out3 = jax.block_until_ready(support_loss(tokens_odd, 5.0, alpha))
    ref3 = _support_loss_ref(tokens_odd, 5.0, alpha)
    assert jnp.allclose(out3, ref3, rtol=1e-5, atol=1e-6), (out3, ref3)

    # 4) bf16 tokens stay bf16 through the DMA (pack=16 path).
    tokens_bf16 = jax.random.normal(key, (2, 8, 128), dtype=jnp.bfloat16)
    out4 = jax.block_until_ready(support_loss(tokens_bf16, 12.0, alpha))
    ref4 = _support_loss_ref(tokens_bf16, 12.0, alpha)
    assert jnp.allclose(out4, ref4, rtol=1e-4, atol=1e-5), (out4, ref4)

    # 5) Force a multi-step, two-core grid on the ragged input: exercises the
    #    in-kernel row mask, the partial edge block, and the index_map clamp
    #    for fully out-of-range blocks (works on single-TC chips too).
    out5 = jax.block_until_ready(
        support_loss(tokens_odd, 5.0, alpha, num_cores=2, tm_cap=64))
    assert jnp.allclose(out5, ref3, rtol=1e-5, atol=1e-6), (out5, ref3)

    print("KERNEL_OK")
</pallas_src>

<mosaic_0001>
module attributes {stable_mosaic.version = 11 : i64} {
  func.func @kernel(%arg0: i32, %arg1: i32, %arg2: memref<16x32xf32, #tpu.memory_space<vmem>>, %arg3: memref<1x8x128xf32, #tpu.memory_space<vmem>>, %arg4: memref<16x1xf32, #tpu.memory_space<vmem>>) attributes {dimension_semantics = [#tpu.dimension_semantics<parallel>, #tpu.dimension_semantics<arbitrary>], iteration_bounds = array<i64: 1, 1>, scalar_prefetch = 0 : i64, scratch_operands = 1 : i64, tpu.core_type = #tpu.core_type<tc>, window_params = [{transform_indices = @transform_0, window_bounds = array<i64: 16, 32>}, {transform_indices = @transform_1, window_bounds = array<i64: 1, 8, 128>}]} {
    %c0_i32 = arith.constant 0 : i32
    %0 = arith.cmpi eq, %arg1, %c0_i32 : i32
    %1 = arith.extui %0 : i1 to i32
    %c0_i32_0 = arith.constant 0 : i32
    %2 = arith.cmpi ne, %1, %c0_i32_0 : i32
    scf.if %2 {
      %cst_10 = arith.constant 0.000000e+00 : f32
      %26 = vector.broadcast %cst_10 : f32 to vector<16x1xf32>
      %c0_11 = arith.constant 0 : index
      %c0_12 = arith.constant 0 : index
      %27 = vector.load %arg4[%c0_11, %c0_12] : memref<16x1xf32, #tpu.memory_space<vmem>>, vector<16x1xf32>
      tpu.vector_store %arg4[%c0_11, %c0_12], %26 {strides = array<i32>} : memref<16x1xf32, #tpu.memory_space<vmem>>, vector<16x1xf32>,
    } else {
    }
    %c1_i32 = arith.constant 1 : i32
    %3 = arith.muli %arg0, %c1_i32 : i32
    %4 = arith.addi %3, %arg1 : i32
    %c16_i32 = arith.constant 16 : i32
    %5 = arith.muli %4, %c16_i32 : i32
    %6 = tpu.iota {dimensions = array<i32: 0>} : vector<16x1xi32>
    %7 = vector.broadcast %5 : i32 to vector<16x1xi32>
    %8 = arith.addi %7, %6 : vector<16x1xi32>
    %c16_i32_1 = arith.constant 16 : i32
    %9 = vector.broadcast %c16_i32_1 : i32 to vector<16x1xi32>
    %10 = arith.cmpi slt, %8, %9 : vector<16x1xi32>
    %c0 = arith.constant 0 : index
    %c0_2 = arith.constant 0 : index
    %11 = vector.load %arg2[%c0, %c0_2] : memref<16x32xf32, #tpu.memory_space<vmem>>, vector<16x32xf32>
    %cst = arith.constant 0.000000e+00 : f32
    %12 = vector.shape_cast %10 : vector<16x1xi1> to vector<16x1xi1>
    %13 = vector.broadcast %12 : vector<16x1xi1> to vector<16x32xi1>
    %14 = vector.broadcast %cst : f32 to vector<16x32xf32>
    %15 = arith.select %13, %11, %14 : vector<16x32xi1>, vector<16x32xf32>
    %16 = arith.mulf %15, %15 : vector<16x32xf32>
    %cst_3 = arith.constant dense<0.000000e+00> : vector<16xf32>
    %17 = vector.multi_reduction <add>, %16, %cst_3 [1] : vector<16x32xf32> to vector<16xf32>
    %18 = vector.shape_cast %17 : vector<16xf32> to vector<16x1xf32>
    %c0_4 = arith.constant 0 : index
    %c0_5 = arith.constant 0 : index
    %19 = vector.load %arg4[%c0_4, %c0_5] : memref<16x1xf32, #tpu.memory_space<vmem>>, vector<16x1xf32>
    %20 = math.sqrt %18 : vector<16x1xf32>
    %21 = arith.addf %19, %20 : vector<16x1xf32>
    %c0_6 = arith.constant 0 : index
    %c0_7 = arith.constant 0 : index
    %22 = vector.load %arg4[%c0_6, %c0_7] : memref<16x1xf32, #tpu.memory_space<vmem>>, vector<16x1xf32>
    tpu.vector_store %arg4[%c0_6, %c0_7], %21 {strides = array<i32>} : memref<16x1xf32, #tpu.memory_space<vmem>>, vector<16x1xf32>,
    %c0_i32_8 = arith.constant 0 : i32
    %23 = arith.cmpi eq, %arg1, %c0_i32_8 : i32
    %24 = arith.extui %23 : i1 to i32
    %c0_i32_9 = arith.constant 0 : i32
    %25 = arith.cmpi ne, %24, %c0_i32_9 : i32
    scf.if %25 {
      %c0_10 = arith.constant 0 : index
      %c0_11 = arith.constant 0 : index
      %26 = vector.load %arg4[%c0_10, %c0_11] : memref<16x1xf32, #tpu.memory_space<vmem>>, vector<16x1xf32>
      %27 = vector.shape_cast %26 : vector<16x1xf32> to vector<1x16x1xf32>
      %cst_12 = arith.constant dense<0.000000e+00> : vector<1xf32>
      %28 = vector.multi_reduction <add>, %27, %cst_12 [1, 2] : vector<1x16x1xf32> to vector<1xf32>
      %29 = vector.shape_cast %28 : vector<1xf32> to vector<1x1x1xf32>
      %30 = vector.extract %29[0, 0, 0] : f32 from vector<1x1x1xf32>
      %31 = vector.broadcast %30 : f32 to vector<1x8x128xf32>
      %c0_13 = arith.constant 0 : index
      %c0_14 = arith.constant 0 : index
      %c0_15 = arith.constant 0 : index
      %32 = vector.load %arg3[%c0_13, %c0_14, %c0_15] : memref<1x8x128xf32, #tpu.memory_space<vmem>>, vector<1x8x128xf32>
      tpu.vector_store %arg3[%c0_13, %c0_14, %c0_15], %31 {strides = array<i32>} : memref<1x8x128xf32, #tpu.memory_space<vmem>>, vector<1x8x128xf32>,
    } else {
    }
    return
  }
  func.func @transform_0(%arg0: i32, %arg1: i32) -> (i32, i32) {
    %c1_i32 = arith.constant 1 : i32
    %0 = arith.muli %arg0, %c1_i32 : i32
    %1 = arith.addi %0, %arg1 : i32
    %c0_i32 = arith.constant 0 : i32
    %2 = arith.minsi %1, %c0_i32 : i32
    %c0_i32_0 = arith.constant 0 : i32
    %c0_i32_1 = arith.constant 0 : i32
    return %2, %c0_i32_0 : i32, i32
  }
  func.func @transform_1(%arg0: i32, %arg1: i32) -> (i32, i32, i32) {
    %c0_i32 = arith.constant 0 : i32
    %c0_i32_0 = arith.constant 0 : i32
    %c0_i32_1 = arith.constant 0 : i32
    return %arg0, %c0_i32, %c0_i32_0 : i32, i32, i32
  }
}

</mosaic_0001>

<llo_original>
// kernel: tpu_custom_call.1
$region0: #{tpu_custom_call.1}
  #allocation0 [shape = 'u32[]', space=smem, size = 0x4, offset = 0x4, fixed_abs, tag = 'smem constant byte address 0x4 - core index']
  #allocation1 [shape = 'u32[144,128]{1,0:T(1,128)}', space=vmem, size = 0x12000, scoped, tag = 'internal scratch']
  #allocation2 [shape = 'f32[16,1]{1,0:T(8,128)}', space=vmem, size = 0x2000, scoped, tag = 'scratch operand']
  %s0 = inlined_call_operand.hbm [shape: f32[16,32], index: 0, kind: input, shape index: {}]
  %s1 = inlined_call_operand.hbm [shape: f32[1,8,128], index: 1, kind: output, shape index: {}]
  %s2 = sld [smem:[#allocation0]]
  $region26: #{tpu_custom_call.1} parent=0
    _
  %s4 = ssub.s32 1, %s2
  %s5 = scalar_select 0, %s4, %s2
  $region1: #{tpu_custom_call.1} parent=0
    #allocation3 [shape = 'u8[8192]{0}', space=vmem, size = 0x2000, scoped, tag = 'input window, operand 0, single buffered']
    #allocation4 [shape = 's32[1]{0}', space=sflag, size = 0x4, scoped, tag = 'scoped memory for tpu_custom_call.1']
    #allocation5 [shape = 's32[1]{0}', space=sflag, size = 0x4, scoped, tag = 'scoped memory for tpu_custom_call.1']
    #allocation6 [shape = 'u8[4096]{0}', space=vmem, size = 0x1000, scoped, tag = 'output window, operand 0, single buffered']
    %6 = vsyncpa [#allocation4], 0
    %7 = vsyncpa [#allocation5], 0
    // Predicated region
    $region2: #{tpu_custom_call.1} parent=1 // pred_check
      _
    $region3: #{tpu_custom_call.1} parent=1 // pred_check_branch
      %9 = sbr.rel (0) target = $region5
    $region4: #{tpu_custom_call.1} parent=1 // pred_region
      %s10 = sadd.s32 0, 0
      %p11 = scmp.lt.s32.totalorder %s10, 0
      %s12 = scalar_select %p11, %s10, 0
      %s13 = smul.u32 2, %s12
      %s15 = ssub.s32 256, 256
      %16 = vsyncadd [#allocation4], %s15
      %s17 = smul.addr %s13, 128
      %s18 = scalar_lea.hbm %s0, %s17
      %s19 = sshll.u32 [#allocation3], 4
      %s20 = int_to_ptr.vmem [resolvable:$true] %s19
      %25 = dma.hbm_to_vmem [thread:$0]  %s18, 256, %s20, [#allocation4], 128, 128, 8
    $region5: #{tpu_custom_call.1} parent=1 // pred_fallthru
      _
    // Predicated region
    $region6: #{tpu_custom_call.1} parent=1 // pred_check
      _
    $region7: #{tpu_custom_call.1} parent=1 // pred_check_branch
      %27 = sbr.rel (0) target = $region9
    $region8: #{tpu_custom_call.1} parent=1 // pred_region
      %28 = dma.done [#allocation4], 256
    $region9: #{tpu_custom_call.1} parent=1 // pred_fallthru
      _
    %s29 = sadd.s32 0, 0
    %p30 = scmp.lt.s32.totalorder %s29, 0
    %s31 = scalar_select %p30, %s29, 0
    %s32 = smul.u32 2, %s31
    %p33 = scmp.eq.s32.totalorder 0, 0
    // Predicated region
    $region10: #{tpu_custom_call.1} parent=1 // pred_check
      %p34 = pneg %p33
    $region11: #{tpu_custom_call.1} parent=1 // pred_check_branch
      %36 = sbr.rel (%p34) target = $region13
    $region12: #{tpu_custom_call.1} parent=1 // pred_region
      %vm37 = vcmask 7168
      %38 = vst.msk [vmem:[#allocation2] sm:$0xff] %vm37, 0.0
      %39 = vst.msk [vmem:[#allocation2 + $0x8] sm:$0xff] %vm37, 0.0
    $region13: #{tpu_custom_call.1} parent=1 // pred_fallthru
      _
    %s40 = sadd.s32 0, 0
    %s41 = smul.u32 %s40, 16
    %v42 = vlaneseq
    %v43 = vshrl.u32 %v42, 7
    %v44 = vadd.s32 %v43, 8
    %v45 = vstv %s41
    %v46 = vadd.s32 %v45, %v43
    %v47 = vadd.s32 %v45, %v44
    %vm48 = vcmp.lt.s32.totalorder %v46, 16
    %vm49 = vcmp.lt.s32.totalorder %v47, 16
    %v50 = vld [vmem:[#allocation3] sm:$0xff]
    %v51 = vld [vmem:[#allocation3 + $0x8] sm:$0xff]
    %v52 = vsel %vm48, 1, 0
    %v53 = vsel %vm49, 1, 0
    %vm54 = vcmp.eq.s32.totalorder %v52, 1
    %vm55 = vcmp.eq.s32.totalorder %v53, 1
    %v56 = vsel %vm54, %v50, 0.0
    %v57 = vsel %vm55, %v51, 0.0
    %v58 = vmul.f32 %v56, %v56
    %v59 = vmul.f32 %v57, %v57
    %vm60 = vcmask 261120
    %v61 = vsel %vm60, %v58, 0.0
    %62 = vadd.xlane.f32.xlu0 %v61
    %v63 = vpop.xlane.xlu0 %62
    %v64 = vsel %vm60, %v59, 0.0
    %65 = vadd.xlane.f32.xlu0 %v64
    %v66 = vpop.xlane.xlu0 %65
    %v67 = vld [vmem:[#allocation2] sm:$0xff]
    %v68 = vld [vmem:[#allocation2 + $0x8] sm:$0xff]
    %v69 = vrsqrt.pop %v63
    %v70 = vmul.f32 %v63, %v69
    %vm71 = vcmp.eq.f32.partialorder %v63, inf
    %v72 = vsel %vm71, %v63, %v70
    %vm73 = vcmp.eq.f32.partialorder %v63, 0.0
    %v74 = vand.u32 %v63, 2147483648
    %v75 = vsel %vm73, %v74, %v72
    %v76 = vrsqrt.pop %v66
    %v77 = vmul.f32 %v66, %v76
    %vm78 = vcmp.eq.f32.partialorder %v66, inf
    %v79 = vsel %vm78, %v66, %v77
    %vm80 = vcmp.eq.f32.partialorder %v66, 0.0
    %v81 = vand.u32 %v66, 2147483648
    %v82 = vsel %vm80, %v81, %v79
    %v83 = vadd.f32 %v67, %v75
    %v84 = vadd.f32 %v68, %v82
    %vm85 = vcmask 7168
    %86 = vst.msk [vmem:[#allocation2] sm:$0xff] %vm85, %v83
    %87 = vst.msk [vmem:[#allocation2 + $0x8] sm:$0xff] %vm85, %v84
    // Predicated region
    $region14: #{tpu_custom_call.1} parent=1 // pred_check
      %p88 = pneg %p33
    $region15: #{tpu_custom_call.1} parent=1 // pred_check_branch
      %90 = sbr.rel (%p88) target = $region17
    $region16: #{tpu_custom_call.1} parent=1 // pred_region
      %v91 = vld [vmem:[#allocation2] sm:$0xff]
      %v92 = vld [vmem:[#allocation2 + $0x8] sm:$0xff]
      %v93 = vsel %vm85, %v91, 0.0
      %v94 = vsel %vm85, %v92, 0.0
      %v95 = vadd.f32 %v93, %v94
      %96 = vadd.xlane.f32.xlu0 %v95
      %v97 = vpop.xlane.xlu0 %96
      %v98 = vrot.slane %v97, 4
      %v99 = vadd.f32 %v97, %v98
      %v100 = vrot.slane %v99, 2
      %v101 = vadd.f32 %v99, %v100
      %v102 = vrot.slane %v101, 1
      %v103 = vadd.f32 %v101, %v102
      %s104 = vtos %v103
      %v105 = vstv %s104
      %106 = vst [vmem:[#allocation6] sm:$0xff] %v105
    $region17: #{tpu_custom_call.1} parent=1 // pred_fallthru
      _
    // Predicated region
    $region18: #{tpu_custom_call.1} parent=1 // pred_check
      _
    $region19: #{tpu_custom_call.1} parent=1 // pred_check_branch
      %108 = sbr.rel (0) target = $region21
    $region20: #{tpu_custom_call.1} parent=1 // pred_region
      %s110 = ssub.s32 128, 128
      %111 = vsyncadd [#allocation5], %s110
      %s113 = sshll.u32 [#allocation6], 4
      %s114 = int_to_ptr.vmem [resolvable:$true] %s113
      %116 = dma.vmem_to_hbm [thread:$0]  %s114, 128, %s1, [#allocation5]
    $region21: #{tpu_custom_call.1} parent=1 // pred_fallthru
      _
    // Predicated region
    $region22: #{tpu_custom_call.1} parent=1 // pred_check
      _
    $region23: #{tpu_custom_call.1} parent=1 // pred_check_branch
      %118 = sbr.rel (0) target = $region25
    $region24: #{tpu_custom_call.1} parent=1 // pred_region
      %119 = dma.done [#allocation5], 128
    $region25: #{tpu_custom_call.1} parent=1 // pred_fallthru
      _
    %120 = vsyncpa [#allocation4], 1
    %121 = vsyncpa [#allocation5], 1

</llo_original>
